<compile_context>
chip_gen: v7x
topology: tpu7x:2x2x1
jax: 0.10.0
libtpu: 0.0.40
codegen_flags: <defaults>
</compile_context>

<pallas_src>
import functools

import jax
import jax.numpy as jnp
import numpy as np
from jax import lax
from jax.experimental import pallas as pl
from jax.experimental.pallas import tpu as pltpu

# Hyper-parameters from VicsLoss.__init__ defaults (deterministic, no checkpoint).
LAMBDA_PARAM = 1.0   # not used by the returned value; kept for parity
MU_PARAM = 1.0       # not used by the returned value; kept for parity
NU_PARAM = 0.04      # not used by the returned value; kept for parity
GAMA_PARAM = 0.8
VAR_EPS = 1e-4       # eps inside variance_loss
COS_EPS = 1e-8       # eps of F.cosine_similarity (clamps the product of norms)


# ----------------------------------------------------------------------------
# Single-invocation kernel: whole arrays resident in VMEM (small problems).
# ----------------------------------------------------------------------------
def _vics_small_kernel(za_ref, zb_ref, out_ref, *, compute_components):
    za = za_ref[...].astype(jnp.float32)
    zb = zb_ref[...].astype(jnp.float32)
    B, D = za.shape  # static

    # ---- negative cosine similarity along dim=1 (drives the returned loss) ----
    rowdot = jnp.sum(za * zb, axis=1, keepdims=True)                 # (B, 1)
    na = jnp.sqrt(jnp.sum(za * za, axis=1, keepdims=True))
    nb = jnp.sqrt(jnp.sum(zb * zb, axis=1, keepdims=True))
    denom = jnp.maximum(na * nb, COS_EPS)                            # clamp the product
    cos = rowdot * pl.reciprocal(denom, approx=True)                 # EUP slot
    similar_loss = -jnp.sum(cos) * (1.0 / B)
    loss = GAMA_PARAM * (1.0 + similar_loss)

    if compute_components:
        # ---- invariance: F.mse_loss(z_a, z_b) ----
        diff = za - zb
        inv_loss = jnp.sum(diff * diff) * (1.0 / (B * D))

        inv_bm1 = 1.0 / (B - 1)

        def _var_cov(x):
            # shared centering / column sum-of-squares for variance & cov diagonal
            mean = jnp.sum(x, axis=0, keepdims=True) * (1.0 / B)     # (1, D)
            xc = x - mean
            col_sq = jnp.sum(xc * xc, axis=0, keepdims=True)         # (1, D)
            var = col_sq * inv_bm1                                   # unbiased (torch.var)
            std = jnp.sqrt(var + VAR_EPS)
            var_l = jnp.mean(jnp.maximum(1.0 - std, 0.0))

            # covariance: sum_offdiag(cov^2) = ||cov||_F^2 - sum(diag(cov)^2)
            # with ||Xc^T Xc||_F^2 == ||Xc Xc^T||_F^2 -> pick min(B, D) Gram.
            if B <= D:
                g = lax.dot_general(xc, xc, (((1,), (1,)), ((), ())),
                                    preferred_element_type=jnp.float32)   # (B, B)
            else:
                g = lax.dot_general(xc, xc, (((0,), (0,)), ((), ())),
                                    preferred_element_type=jnp.float32)   # (D, D)
            frob = jnp.sum(g * g) * (inv_bm1 * inv_bm1)              # ||cov||_F^2
            cov_l = (frob - jnp.sum(var * var)) * (1.0 / D)
            return var_l, cov_l

        var_a, cov_a = _var_cov(za)
        var_b, cov_b = _var_cov(zb)
        inv_out = inv_loss
        var_out = 0.5 * (var_a + var_b)
        cov_out = cov_a + cov_b
    else:
        inv_out = jnp.float32(0.0)
        var_out = jnp.float32(0.0)
        cov_out = jnp.float32(0.0)

    out_ref[0] = inv_out
    out_ref[1] = var_out
    out_ref[2] = cov_out
    out_ref[3] = loss


# ----------------------------------------------------------------------------
# Batch-tiled streaming kernel: grid over batch, accumulate-then-correct.
# ----------------------------------------------------------------------------
def _vics_stream_kernel(za_ref, zb_ref, out_ref,
                        sa_ref, sqa_ref, sb_ref, sqb_ref,
                        ga_ref, gb_ref, scal_ref,
                        *, b_total, compute_components):
    i = pl.program_id(0)
    nsteps = pl.num_programs(0)
    TB, D = za_ref.shape  # static block shape

    # --------- init accumulators at the first grid step ---------
    @pl.when(i == 0)
    def _init():
        sa_ref[...] = jnp.zeros_like(sa_ref)
        sqa_ref[...] = jnp.zeros_like(sqa_ref)
        sb_ref[...] = jnp.zeros_like(sb_ref)
        sqb_ref[...] = jnp.zeros_like(sqb_ref)
        scal_ref[0] = jnp.float32(0.0)   # sum(diff^2)
        scal_ref[1] = jnp.float32(0.0)   # sum(cos)
        if compute_components:
            ga_ref[...] = jnp.zeros_like(ga_ref)
            gb_ref[...] = jnp.zeros_like(gb_ref)

    # --------- per-tile streaming statistics ---------
    row = lax.broadcasted_iota(jnp.int32, (TB, 1), 0) + i * TB
    valid = row < b_total                                            # (TB, 1) bool
    za = jnp.where(valid, za_ref[...].astype(jnp.float32), 0.0)
    zb = jnp.where(valid, zb_ref[...].astype(jnp.float32), 0.0)

    # cosine term: invalid rows contribute exactly 0
    rowdot = jnp.sum(za * zb, axis=1, keepdims=True)
    na = jnp.sqrt(jnp.sum(za * za, axis=1, keepdims=True))
    nb = jnp.sqrt(jnp.sum(zb * zb, axis=1, keepdims=True))
    denom = jnp.maximum(na * nb, COS_EPS)
    scal_ref[1] = scal_ref[1] + jnp.sum(rowdot * pl.reciprocal(denom, approx=True))

    if compute_components:
        diff = za - zb
        scal_ref[0] = scal_ref[0] + jnp.sum(diff * diff)
        sa_ref[...] += jnp.sum(za, axis=0, keepdims=True)
        sqa_ref[...] += jnp.sum(za * za, axis=0, keepdims=True)
        sb_ref[...] += jnp.sum(zb, axis=0, keepdims=True)
        sqb_ref[...] += jnp.sum(zb * zb, axis=0, keepdims=True)
        # raw (uncentered) Gram accumulators; centered at finalize
        ga_ref[...] += lax.dot_general(za, za, (((0,), (0,)), ((), ())),
                                       preferred_element_type=jnp.float32)
        gb_ref[...] += lax.dot_general(zb, zb, (((0,), (0,)), ((), ())),
                                       preferred_element_type=jnp.float32)

    # --------- finalize at the last grid step ---------
    @pl.when(i == nsteps - 1)
    def _finalize():
        inv_b = 1.0 / b_total
        cos_mean = scal_ref[1] * inv_b
        loss = GAMA_PARAM * (1.0 - cos_mean)   # gama * (1 + (-mean(cos)))

        if compute_components:
            inv_loss = scal_ref[0] * (1.0 / (b_total * D))
            inv_bm1 = 1.0 / (b_total - 1)

            def _var_cov(s_ref, sq_ref, g_ref):
                mean = s_ref[...] * inv_b                                  # (1, D)
                # sum((x - m)^2) = sum(x^2) - B * m^2   (accumulate-then-correct)
                col_sq = jnp.maximum(sq_ref[...] - b_total * mean * mean, 0.0)
                var = col_sq * inv_bm1
                std = jnp.sqrt(var + VAR_EPS)
                var_l = jnp.mean(jnp.maximum(1.0 - std, 0.0))

                g = g_ref[...]
                # ||G - B*m^T m||_F^2 = sum(G^2) - 2B * (m G m^T) + B^2 * (sum m^2)^2
                gm = lax.dot_general(mean, g, (((1,), (0,)), ((), ())),
                                     preferred_element_type=jnp.float32)   # (1, D)
                mgm = jnp.sum(gm * mean)
                mm = jnp.sum(mean * mean)
                frob_c = (jnp.sum(g * g)
                          - 2.0 * b_total * mgm
                          + (float(b_total) * float(b_total)) * (mm * mm))
                frob = frob_c * (inv_bm1 * inv_bm1)                        # ||cov||_F^2
                cov_l = (frob - jnp.sum(var * var)) * (1.0 / D)
                return var_l, cov_l

            var_a, cov_a = _var_cov(sa_ref, sqa_ref, ga_ref)
            var_b, cov_b = _var_cov(sb_ref, sqb_ref, gb_ref)
            out_ref[0] = inv_loss
            out_ref[1] = 0.5 * (var_a + var_b)
            out_ref[2] = cov_a + cov_b
        else:
            out_ref[0] = jnp.float32(0.0)
            out_ref[1] = jnp.float32(0.0)
            out_ref[2] = jnp.float32(0.0)
        out_ref[3] = loss


# ----------------------------------------------------------------------------
# Wrapper
# ----------------------------------------------------------------------------
_SINGLE_SHOT_BYTES = 8 * 1024 * 1024  # whole-array path for small inputs


def _auto_batch_tile(B, D):
    """Streaming batch tile: MXU/sublane aligned, sized for VMEM double-buffering."""
    budget = 24 * 1024 * 1024                 # 2 inputs x 2 pipeline buffers, f32
    tb = budget // (4 * D * 4)
    if tb >= 256:
        tb = (tb // 256) * 256                # multiple of 256 (full MXU K v6e/v7x)
    else:
        tb = max(8, (tb // 8) * 8)
    return int(tb)


def vics_loss(z_a, z_b, *, compute_components=True, batch_tile=None):
    """Returns (loss, comps) with comps = [invariance, variance, covariance, loss].

    The torch module's forward returns only `loss = gama * (1 + similar_loss)`.
    """
    assert z_a.shape == z_b.shape, "z_a and z_b must have same shape"
    assert z_a.ndim == 2, "expected (batch, dim) inputs"
    B, D = z_a.shape
    assert B > 1, "batch size must be > 1"

    if batch_tile is None:
        if 2 * B * D * 4 <= _SINGLE_SHOT_BYTES:
            batch_tile = 0                    # single-shot path
        else:
            batch_tile = _auto_batch_tile(B, D)
    if batch_tile:
        batch_tile = max(8, (int(batch_tile) // 8) * 8)

    use_stream = bool(batch_tile) and batch_tile < B

    if not use_stream:
        kern = functools.partial(_vics_small_kernel,
                                 compute_components=compute_components)
        comps = pl.pallas_call(
            kern,
            out_shape=jax.ShapeDtypeStruct((4,), jnp.float32),
            in_specs=[pl.BlockSpec(memory_space=pltpu.MemorySpace.VMEM),
                      pl.BlockSpec(memory_space=pltpu.MemorySpace.VMEM)],
            out_specs=pl.BlockSpec(memory_space=pltpu.MemorySpace.SMEM),
        )(z_a, z_b)
    else:
        TB = batch_tile
        n_tiles = pl.cdiv(B, TB)
        gram_shape = (D, D) if compute_components else (8, 128)  # dummy when gated off

        gram_bytes = 2 * gram_shape[0] * gram_shape[1] * 4
        in_bytes = 2 * 2 * TB * D * 4          # 2 inputs x 2 pipeline buffers
        vmem_limit = min(100 * 1024 * 1024,
                         max(32 * 1024 * 1024, in_bytes + gram_bytes + (4 << 20)))

        kern = functools.partial(_vics_stream_kernel, b_total=B,
                                 compute_components=compute_components)
        grid_spec = pltpu.PrefetchScalarGridSpec(
            num_scalar_prefetch=0,
            grid=(n_tiles,),
            in_specs=[pl.BlockSpec((TB, D), lambda i: (i, 0)),
                      pl.BlockSpec((TB, D), lambda i: (i, 0))],
            out_specs=pl.BlockSpec((4,), lambda i: (0,),
                                   memory_space=pltpu.MemorySpace.SMEM),
            scratch_shapes=[
                pltpu.VMEM((1, D), jnp.float32),     # sum(z_a)     per column
                pltpu.VMEM((1, D), jnp.float32),     # sum(z_a^2)   per column
                pltpu.VMEM((1, D), jnp.float32),     # sum(z_b)     per column
                pltpu.VMEM((1, D), jnp.float32),     # sum(z_b^2)   per column
                pltpu.VMEM(gram_shape, jnp.float32), # raw Gram of z_a
                pltpu.VMEM(gram_shape, jnp.float32), # raw Gram of z_b
                pltpu.SMEM((2,), jnp.float32),       # [sum(diff^2), sum(cos)]
            ])
        comps = pl.pallas_call(
            kern,
            out_shape=jax.ShapeDtypeStruct((4,), jnp.float32),
            grid_spec=grid_spec,
            compiler_params=pltpu.CompilerParams(
                dimension_semantics=("arbitrary",),
                vmem_limit_bytes=int(vmem_limit)),
        )(z_a, z_b)

    return comps[3], comps


# ----------------------------------------------------------------------------
# Pure-JAX reference (mirrors the torch module) for a correctness check.
# ----------------------------------------------------------------------------
def _vics_ref(z_a, z_b):
    za = z_a.astype(jnp.float32)
    zb = z_b.astype(jnp.float32)
    B, D = za.shape
    inv_loss = jnp.mean((za - zb) ** 2)

    def var_l(x):
        std = jnp.sqrt(jnp.var(x, axis=0, ddof=1) + VAR_EPS)
        return jnp.mean(jnp.maximum(1.0 - std, 0.0))

    def cov_l(x):
        xc = x - jnp.mean(x, axis=0, keepdims=True)
        cov = (xc.T @ xc) / (B - 1)
        off = cov - jnp.diag(jnp.diag(cov))
        return jnp.sum(off ** 2) / D

    var_loss = 0.5 * (var_l(za) + var_l(zb))
    cov_loss = cov_l(za) + cov_l(zb)
    na = jnp.linalg.norm(za, axis=1)
    nb = jnp.linalg.norm(zb, axis=1)
    cos = jnp.sum(za * zb, axis=1) / jnp.maximum(na * nb, COS_EPS)
    similar = -jnp.mean(cos)
    loss = GAMA_PARAM * (1.0 + similar)
    return jnp.stack([inv_loss, var_loss, cov_loss, loss])


if __name__ == "__main__":
    key = jax.random.PRNGKey(0)
    ka, kb, kc, kd = jax.random.split(key, 4)

    # Tiny shape consistent with the module -> single-shot kernel path.
    B0, D0 = 8, 32
    z_a0 = jax.random.normal(ka, (B0, D0), dtype=jnp.float32)
    z_b0 = jax.random.normal(kb, (B0, D0), dtype=jnp.float32)
    loss0, comps0 = vics_loss(z_a0, z_b0)
    jax.block_until_ready(loss0)
    jax.block_until_ready(comps0)
    ref0 = _vics_ref(z_a0, z_b0)
    np.testing.assert_allclose(np.asarray(comps0), np.asarray(ref0),
                               rtol=1e-2, atol=2e-3)

    # Slightly larger (still small) shape -> batch-tiled streaming path (2 tiles).
    B1, D1 = 256, 128
    z_a1 = jax.random.normal(kc, (B1, D1), dtype=jnp.float32)
    z_b1 = jax.random.normal(kd, (B1, D1), dtype=jnp.float32)
    loss1, comps1 = vics_loss(z_a1, z_b1, batch_tile=128)
    jax.block_until_ready(loss1)
    jax.block_until_ready(comps1)
    ref1 = _vics_ref(z_a1, z_b1)
    np.testing.assert_allclose(np.asarray(comps1), np.asarray(ref1),
                               rtol=1e-2, atol=2e-3)

    print("KERNEL_OK")
</pallas_src>

<mosaic_0001>
module attributes {stable_mosaic.version = 11 : i64} {
  func.func @_vics_small_kernel(%arg0: memref<8x32xf32, #tpu.memory_space<vmem>>, %arg1: memref<8x32xf32, #tpu.memory_space<vmem>>, %arg2: memref<4xf32, #tpu.memory_space<smem>>) attributes {dimension_semantics = [], scalar_prefetch = 0 : i64, scratch_operands = 0 : i64, tpu.core_type = #tpu.core_type<tc>} {
    %c0 = arith.constant 0 : index
    %c0_0 = arith.constant 0 : index
    %0 = vector.load %arg0[%c0, %c0_0] : memref<8x32xf32, #tpu.memory_space<vmem>>, vector<8x32xf32>
    %c0_1 = arith.constant 0 : index
    %c0_2 = arith.constant 0 : index
    %1 = vector.load %arg1[%c0_1, %c0_2] : memref<8x32xf32, #tpu.memory_space<vmem>>, vector<8x32xf32>
    %2 = arith.mulf %0, %1 : vector<8x32xf32>
    %cst = arith.constant dense<0.000000e+00> : vector<8xf32>
    %3 = vector.multi_reduction <add>, %2, %cst [1] : vector<8x32xf32> to vector<8xf32>
    %4 = vector.shape_cast %3 : vector<8xf32> to vector<8x1xf32>
    %5 = arith.mulf %0, %0 : vector<8x32xf32>
    %cst_3 = arith.constant dense<0.000000e+00> : vector<8xf32>
    %6 = vector.multi_reduction <add>, %5, %cst_3 [1] : vector<8x32xf32> to vector<8xf32>
    %7 = vector.shape_cast %6 : vector<8xf32> to vector<8x1xf32>
    %8 = math.sqrt %7 : vector<8x1xf32>
    %9 = arith.mulf %1, %1 : vector<8x32xf32>
    %cst_4 = arith.constant dense<0.000000e+00> : vector<8xf32>
    %10 = vector.multi_reduction <add>, %9, %cst_4 [1] : vector<8x32xf32> to vector<8xf32>
    %11 = vector.shape_cast %10 : vector<8xf32> to vector<8x1xf32>
    %12 = math.sqrt %11 : vector<8x1xf32>
    %13 = arith.mulf %8, %12 : vector<8x1xf32>
    %cst_5 = arith.constant 9.99999993E-9 : f32
    %14 = vector.broadcast %cst_5 : f32 to vector<8x1xf32>
    %15 = arith.maximumf %13, %14 : vector<8x1xf32>
    %16 = tpu.reciprocal %15 {approx = true} : vector<8x1xf32> -> vector<8x1xf32>
    %17 = arith.mulf %4, %16 : vector<8x1xf32>
    %18 = vector.shape_cast %17 : vector<8x1xf32> to vector<1x8x1xf32>
    %cst_6 = arith.constant dense<0.000000e+00> : vector<1xf32>
    %19 = vector.multi_reduction <add>, %18, %cst_6 [1, 2] : vector<1x8x1xf32> to vector<1xf32>
    %20 = vector.shape_cast %19 : vector<1xf32> to vector<1x1x1xf32>
    %21 = vector.extract %20[0, 0, 0] : f32 from vector<1x1x1xf32>
    %cst_7 = arith.constant 0.000000e+00 : f32
    %22 = arith.subf %cst_7, %21 : f32
    %cst_8 = arith.constant 1.250000e-01 : f32
    %23 = arith.mulf %22, %cst_8 : f32
    %cst_9 = arith.constant 1.000000e+00 : f32
    %24 = arith.addf %cst_9, %23 : f32
    %cst_10 = arith.constant 8.000000e-01 : f32
    %25 = arith.mulf %cst_10, %24 : f32
    %26 = arith.subf %0, %1 : vector<8x32xf32>
    %27 = arith.mulf %26, %26 : vector<8x32xf32>
    %28 = vector.shape_cast %27 : vector<8x32xf32> to vector<1x8x32xf32>
    %cst_11 = arith.constant dense<0.000000e+00> : vector<1xf32>
    %29 = vector.multi_reduction <add>, %28, %cst_11 [1, 2] : vector<1x8x32xf32> to vector<1xf32>
    %30 = vector.shape_cast %29 : vector<1xf32> to vector<1x1x1xf32>
    %31 = vector.extract %30[0, 0, 0] : f32 from vector<1x1x1xf32>
    %cst_12 = arith.constant 3.906250e-03 : f32
    %32 = arith.mulf %31, %cst_12 : f32
    %cst_13 = arith.constant dense<0.000000e+00> : vector<32xf32>
    %33 = vector.multi_reduction <add>, %0, %cst_13 [0] : vector<8x32xf32> to vector<32xf32>
    %34 = vector.shape_cast %33 : vector<32xf32> to vector<1x32xf32>
    %cst_14 = arith.constant 1.250000e-01 : f32
    %35 = vector.broadcast %cst_14 : f32 to vector<1x32xf32>
    %36 = arith.mulf %34, %35 : vector<1x32xf32>
    %37 = vector.broadcast %36 : vector<1x32xf32> to vector<8x32xf32>
    %38 = arith.subf %0, %37 : vector<8x32xf32>
    %39 = arith.mulf %38, %38 : vector<8x32xf32>
    %cst_15 = arith.constant dense<0.000000e+00> : vector<32xf32>
    %40 = vector.multi_reduction <add>, %39, %cst_15 [0] : vector<8x32xf32> to vector<32xf32>
    %41 = vector.shape_cast %40 : vector<32xf32> to vector<1x32xf32>
    %cst_16 = arith.constant 0.142857149 : f32
    %42 = vector.broadcast %cst_16 : f32 to vector<1x32xf32>
    %43 = arith.mulf %41, %42 : vector<1x32xf32>
    %cst_17 = arith.constant 9.99999974E-5 : f32
    %44 = vector.broadcast %cst_17 : f32 to vector<1x32xf32>
    %45 = arith.addf %43, %44 : vector<1x32xf32>
    %46 = math.sqrt %45 : vector<1x32xf32>
    %cst_18 = arith.constant 1.000000e+00 : f32
    %47 = vector.broadcast %cst_18 : f32 to vector<1x32xf32>
    %48 = arith.subf %47, %46 : vector<1x32xf32>
    %cst_19 = arith.constant 0.000000e+00 : f32
    %49 = vector.broadcast %cst_19 : f32 to vector<1x32xf32>
    %50 = arith.maximumf %48, %49 : vector<1x32xf32>
    %51 = vector.shape_cast %50 : vector<1x32xf32> to vector<1x1x32xf32>
    %cst_20 = arith.constant dense<0.000000e+00> : vector<1xf32>
    %52 = vector.multi_reduction <add>, %51, %cst_20 [1, 2] : vector<1x1x32xf32> to vector<1xf32>
    %53 = vector.shape_cast %52 : vector<1xf32> to vector<1x1x1xf32>
    %54 = vector.extract %53[0, 0, 0] : f32 from vector<1x1x1xf32>
    %cst_21 = arith.constant 3.200000e+01 : f32
    %55 = arith.divf %54, %cst_21 : f32
    %cst_22 = arith.constant dense<0.000000e+00> : vector<8x8xf32>
    %56 = tpu.matmul %38, %38, %cst_22 {dimension_numbers = #tpu.dot_dimension_numbers<[1], [1], [0], [0], [0, 0, 1, 0], [], []>} : vector<8x32xf32>, vector<8x32xf32>, vector<8x8xf32> -> vector<8x8xf32>
    %57 = arith.mulf %56, %56 : vector<8x8xf32>
    %58 = vector.shape_cast %57 : vector<8x8xf32> to vector<1x8x8xf32>
    %cst_23 = arith.constant dense<0.000000e+00> : vector<1xf32>
    %59 = vector.multi_reduction <add>, %58, %cst_23 [1, 2] : vector<1x8x8xf32> to vector<1xf32>
    %60 = vector.shape_cast %59 : vector<1xf32> to vector<1x1x1xf32>
    %61 = vector.extract %60[0, 0, 0] : f32 from vector<1x1x1xf32>
    %cst_24 = arith.constant 0.0204081628 : f32
    %62 = arith.mulf %61, %cst_24 : f32
    %63 = arith.mulf %43, %43 : vector<1x32xf32>
    %64 = vector.shape_cast %63 : vector<1x32xf32> to vector<1x1x32xf32>
    %cst_25 = arith.constant dense<0.000000e+00> : vector<1xf32>
    %65 = vector.multi_reduction <add>, %64, %cst_25 [1, 2] : vector<1x1x32xf32> to vector<1xf32>
    %66 = vector.shape_cast %65 : vector<1xf32> to vector<1x1x1xf32>
    %67 = vector.extract %66[0, 0, 0] : f32 from vector<1x1x1xf32>
    %68 = arith.subf %62, %67 : f32
    %cst_26 = arith.constant 3.125000e-02 : f32
    %69 = arith.mulf %68, %cst_26 : f32
    %cst_27 = arith.constant dense<0.000000e+00> : vector<32xf32>
    %70 = vector.multi_reduction <add>, %1, %cst_27 [0] : vector<8x32xf32> to vector<32xf32>
    %71 = vector.shape_cast %70 : vector<32xf32> to vector<1x32xf32>
    %cst_28 = arith.constant 1.250000e-01 : f32
    %72 = vector.broadcast %cst_28 : f32 to vector<1x32xf32>
    %73 = arith.mulf %71, %72 : vector<1x32xf32>
    %74 = vector.broadcast %73 : vector<1x32xf32> to vector<8x32xf32>
    %75 = arith.subf %1, %74 : vector<8x32xf32>
    %76 = arith.mulf %75, %75 : vector<8x32xf32>
    %cst_29 = arith.constant dense<0.000000e+00> : vector<32xf32>
    %77 = vector.multi_reduction <add>, %76, %cst_29 [0] : vector<8x32xf32> to vector<32xf32>
    %78 = vector.shape_cast %77 : vector<32xf32> to vector<1x32xf32>
    %cst_30 = arith.constant 0.142857149 : f32
    %79 = vector.broadcast %cst_30 : f32 to vector<1x32xf32>
    %80 = arith.mulf %78, %79 : vector<1x32xf32>
    %cst_31 = arith.constant 9.99999974E-5 : f32
    %81 = vector.broadcast %cst_31 : f32 to vector<1x32xf32>
    %82 = arith.addf %80, %81 : vector<1x32xf32>
    %83 = math.sqrt %82 : vector<1x32xf32>
    %cst_32 = arith.constant 1.000000e+00 : f32
    %84 = vector.broadcast %cst_32 : f32 to vector<1x32xf32>
    %85 = arith.subf %84, %83 : vector<1x32xf32>
    %cst_33 = arith.constant 0.000000e+00 : f32
    %86 = vector.broadcast %cst_33 : f32 to vector<1x32xf32>
    %87 = arith.maximumf %85, %86 : vector<1x32xf32>
    %88 = vector.shape_cast %87 : vector<1x32xf32> to vector<1x1x32xf32>
    %cst_34 = arith.constant dense<0.000000e+00> : vector<1xf32>
    %89 = vector.multi_reduction <add>, %88, %cst_34 [1, 2] : vector<1x1x32xf32> to vector<1xf32>
    %90 = vector.shape_cast %89 : vector<1xf32> to vector<1x1x1xf32>
    %91 = vector.extract %90[0, 0, 0] : f32 from vector<1x1x1xf32>
    %cst_35 = arith.constant 3.200000e+01 : f32
    %92 = arith.divf %91, %cst_35 : f32
    %cst_36 = arith.constant dense<0.000000e+00> : vector<8x8xf32>
    %93 = tpu.matmul %75, %75, %cst_36 {dimension_numbers = #tpu.dot_dimension_numbers<[1], [1], [0], [0], [0, 0, 1, 0], [], []>} : vector<8x32xf32>, vector<8x32xf32>, vector<8x8xf32> -> vector<8x8xf32>
    %94 = arith.mulf %93, %93 : vector<8x8xf32>
    %95 = vector.shape_cast %94 : vector<8x8xf32> to vector<1x8x8xf32>
    %cst_37 = arith.constant dense<0.000000e+00> : vector<1xf32>
    %96 = vector.multi_reduction <add>, %95, %cst_37 [1, 2] : vector<1x8x8xf32> to vector<1xf32>
    %97 = vector.shape_cast %96 : vector<1xf32> to vector<1x1x1xf32>
    %98 = vector.extract %97[0, 0, 0] : f32 from vector<1x1x1xf32>
    %cst_38 = arith.constant 0.0204081628 : f32
    %99 = arith.mulf %98, %cst_38 : f32
    %100 = arith.mulf %80, %80 : vector<1x32xf32>
    %101 = vector.shape_cast %100 : vector<1x32xf32> to vector<1x1x32xf32>
    %cst_39 = arith.constant dense<0.000000e+00> : vector<1xf32>
    %102 = vector.multi_reduction <add>, %101, %cst_39 [1, 2] : vector<1x1x32xf32> to vector<1xf32>
    %103 = vector.shape_cast %102 : vector<1xf32> to vector<1x1x1xf32>
    %104 = vector.extract %103[0, 0, 0] : f32 from vector<1x1x1xf32>
    %105 = arith.subf %99, %104 : f32
    %cst_40 = arith.constant 3.125000e-02 : f32
    %106 = arith.mulf %105, %cst_40 : f32
    %107 = arith.addf %55, %92 : f32
    %cst_41 = arith.constant 5.000000e-01 : f32
    %108 = arith.mulf %cst_41, %107 : f32
    %109 = arith.addf %69, %106 : f32
    %c0_42 = arith.constant 0 : index
    %110 = memref.load %arg2[%c0_42] : memref<4xf32, #tpu.memory_space<smem>>
    memref.store %32, %arg2[%c0_42] : memref<4xf32, #tpu.memory_space<smem>>
    %c1 = arith.constant 1 : index
    %111 = memref.load %arg2[%c1] : memref<4xf32, #tpu.memory_space<smem>>
    memref.store %108, %arg2[%c1] : memref<4xf32, #tpu.memory_space<smem>>
    %c2 = arith.constant 2 : index
    %112 = memref.load %arg2[%c2] : memref<4xf32, #tpu.memory_space<smem>>
    memref.store %109, %arg2[%c2] : memref<4xf32, #tpu.memory_space<smem>>
    %c3 = arith.constant 3 : index
    %113 = memref.load %arg2[%c3] : memref<4xf32, #tpu.memory_space<smem>>
    memref.store %25, %arg2[%c3] : memref<4xf32, #tpu.memory_space<smem>>
    return
  }
}

</mosaic_0001>

<llo_original>
// kernel: tpu_custom_call.1
$region0: #{tpu_custom_call.1}
  #allocation0 [shape = 'u32[]', space=smem, size = 0x4, offset = 0x4, fixed_abs, tag = 'smem constant byte address 0x4 - core index']
  #allocation1 [shape = 'u32[144,128]{1,0:T(1,128)}', space=vmem, size = 0x12000, scoped, tag = 'internal scratch']
  %s0 = inlined_call_operand.hbm [shape: f32[8,32], index: 0, kind: input, shape index: {}]
  %s1 = inlined_call_operand.hbm [shape: f32[8,32], index: 1, kind: input, shape index: {}]
  %s2 = inlined_call_operand.hbm [shape: f32[4], index: 2, kind: output, shape index: {}]
  %s3 = sld [smem:[#allocation0]]
  $region26: #{tpu_custom_call.1} parent=0
    _
  %s5 = ssub.s32 1, %s3
  %s6 = scalar_select 0, %s5, %s3
  $region1: #{tpu_custom_call.1} parent=0
    #allocation2 [shape = 'u8[4096]{0}', space=vmem, size = 0x1000, scoped, tag = 'input window, operand 0, single buffered']
    #allocation3 [shape = 's32[1]{0}', space=sflag, size = 0x4, scoped, tag = 'scoped memory for tpu_custom_call.1']
    #allocation4 [shape = 's32[1]{0}', space=sflag, size = 0x4, scoped, tag = 'scoped memory for tpu_custom_call.1']
    #allocation5 [shape = 'u8[4096]{0}', space=vmem, size = 0x1000, scoped, tag = 'input window, operand 1, single buffered']
    #allocation6 [shape = 's32[1]{0}', space=sflag, size = 0x4, scoped, tag = 'scoped memory for tpu_custom_call.1']
    #allocation7 [shape = 'u8[512]{0}', space=smem, size = 0x200, scoped, tag = 'output window, operand 0, single buffered']
    %7 = vsyncpa [#allocation3], 0
    %8 = vsyncpa [#allocation6], 0
    %9 = vsyncpa [#allocation4], 0
    // Predicated region
    $region2: #{tpu_custom_call.1} parent=1 // pred_check
      _
    $region3: #{tpu_custom_call.1} parent=1 // pred_check_branch
      %11 = sbr.rel (0) target = $region5
    $region4: #{tpu_custom_call.1} parent=1 // pred_region
      %s13 = ssub.s32 128, 128
      %14 = vsyncadd [#allocation3], %s13
      %s16 = sshll.u32 [#allocation2], 4
      %s17 = int_to_ptr.vmem [resolvable:$true] %s16
      %19 = dma.hbm_to_vmem [thread:$0]  %s0, 128, %s17, [#allocation3]
    $region5: #{tpu_custom_call.1} parent=1 // pred_fallthru
      _
    // Predicated region
    $region6: #{tpu_custom_call.1} parent=1 // pred_check
      _
    $region7: #{tpu_custom_call.1} parent=1 // pred_check_branch
      %21 = sbr.rel (0) target = $region9
    $region8: #{tpu_custom_call.1} parent=1 // pred_region
      %s23 = ssub.s32 128, 128
      %24 = vsyncadd [#allocation6], %s23
      %s26 = sshll.u32 [#allocation5], 4
      %s27 = int_to_ptr.vmem [resolvable:$true] %s26
      %29 = dma.hbm_to_vmem [thread:$0]  %s1, 128, %s27, [#allocation6]
    $region9: #{tpu_custom_call.1} parent=1 // pred_fallthru
      _
    // Predicated region
    $region10: #{tpu_custom_call.1} parent=1 // pred_check
      _
    $region11: #{tpu_custom_call.1} parent=1 // pred_check_branch
      %31 = sbr.rel (0) target = $region13
    $region12: #{tpu_custom_call.1} parent=1 // pred_region
      %32 = dma.done [#allocation3], 128
    $region13: #{tpu_custom_call.1} parent=1 // pred_fallthru
      _
    // Predicated region
    $region14: #{tpu_custom_call.1} parent=1 // pred_check
      _
    $region15: #{tpu_custom_call.1} parent=1 // pred_check_branch
      %34 = sbr.rel (0) target = $region17
    $region16: #{tpu_custom_call.1} parent=1 // pred_region
      %35 = dma.done [#allocation6], 128
    $region17: #{tpu_custom_call.1} parent=1 // pred_fallthru
      _
    %v36 = vld [vmem:[#allocation2] sm:$0xff]
    %v37 = vld [vmem:[#allocation5] sm:$0xff]
    %v38 = vmul.f32 %v36, %v37
    %vm39 = vcmask 261120
    %v40 = vsel %vm39, %v38, 0.0
    %41 = vadd.xlane.f32.xlu0 %v40
    %v42 = vpop.xlane.xlu0 %41
    %v43 = vmul.f32 %v36, %v36
    %v44 = vsel %vm39, %v43, 0.0
    %45 = vadd.xlane.f32.xlu0 %v44
    %v46 = vpop.xlane.xlu0 %45
    %v47 = vrsqrt.pop %v46
    %v48 = vmul.f32 %v46, %v47
    %vm49 = vcmp.eq.f32.partialorder %v46, inf
    %v50 = vsel %vm49, %v46, %v48
    %vm51 = vcmp.eq.f32.partialorder %v46, 0.0
    %v52 = vand.u32 %v46, 2147483648
    %v53 = vsel %vm51, %v52, %v50
    %v54 = vmul.f32 %v37, %v37
    %v55 = vsel %vm39, %v54, 0.0
    %56 = vadd.xlane.f32.xlu0 %v55
    %v57 = vpop.xlane.xlu0 %56
    %v58 = vrsqrt.pop %v57
    %v59 = vmul.f32 %v57, %v58
    %vm60 = vcmp.eq.f32.partialorder %v57, inf
    %v61 = vsel %vm60, %v57, %v59
    %vm62 = vcmp.eq.f32.partialorder %v57, 0.0
    %v63 = vand.u32 %v57, 2147483648
    %v64 = vsel %vm62, %v63, %v61
    %v65 = vmul.f32 %v53, %v64
    %v66 = vmax.f32 %v65, 1e-08
    %v67 = vrcp.pop %v66
    %v68 = vmul.f32 %v42, %v67
    %vm69 = vcmask 7168
    %v70 = vsel %vm69, %v68, 0.0
    %71 = vadd.xlane.f32.xlu0 %v70
    %v72 = vpop.xlane.xlu0 %71
    %v73 = vrot.slane %v72, 4
    %v74 = vadd.f32 %v72, %v73
    %v75 = vrot.slane %v74, 2
    %v76 = vadd.f32 %v74, %v75
    %v77 = vrot.slane %v76, 1
    %v78 = vadd.f32 %v76, %v77
    %s79 = vtos %v78
    %s80 = ssub.f32 0.0, %s79
    %s81 = smul.f32 %s80, 0.125
    %s82 = sadd.f32 %s81, 1.0
    %s83 = smul.f32 %s82, 0.8
    %v84 = vsub.f32 %v36, %v37
    %v85 = vmul.f32 %v84, %v84
    %v86 = vsel %vm39, %v85, 0.0
    %87 = vadd.xlane.f32.xlu0 %v86
    %v88 = vpop.xlane.xlu0 %87
    %v89 = vrot.slane %v88, 4
    %v90 = vadd.f32 %v88, %v89
    %v91 = vrot.slane %v90, 2
    %v92 = vadd.f32 %v90, %v91
    %v93 = vrot.slane %v92, 1
    %v94 = vadd.f32 %v92, %v93
    %s95 = vtos %v94
    %s96 = smul.f32 %s95, 0.00390625
    %v97 = vsel %vm39, %v36, 0.0
    %v98 = vrot.slane %v97, 4
    %v99 = vadd.f32 %v97, %v98
    %v100 = vrot.slane %v99, 2
    %v101 = vadd.f32 %v99, %v100
    %v102 = vrot.slane %v101, 1
    %v103 = vadd.f32 %v101, %v102
    %v104 = vmul.f32 %v103, 0.125
    %v105 = vsub.f32 %v36, %v104
    %v106 = vmul.f32 %v105, %v105
    %v107 = vsel %vm39, %v106, 0.0
    %v108 = vrot.slane %v107, 4
    %v109 = vadd.f32 %v107, %v108
    %v110 = vrot.slane %v109, 2
    %v111 = vadd.f32 %v109, %v110
    %v112 = vrot.slane %v111, 1
    %v113 = vadd.f32 %v111, %v112
    %v114 = vmul.f32 %v113, 0.14285715
    %v115 = vadd.f32 %v114, 0.0001
    %v116 = vrsqrt.pop %v115
    %v117 = vmul.f32 %v115, %v116
    %vm118 = vcmp.eq.f32.partialorder %v115, inf
    %v119 = vsel %vm118, %v115, %v117
    %vm120 = vcmp.eq.f32.partialorder %v115, 0.0
    %v121 = vand.u32 %v115, 2147483648
    %v122 = vsel %vm120, %v121, %v119
    %v123 = vsub.f32 1.0, %v122
    %v124 = vmax.f32 %v123, 0.0
    %vm125 = vcmask 253952
    %v126 = vsel %vm125, %v124, 0.0
    %127 = vadd.xlane.f32.xlu0 %v126
    %v128 = vpop.xlane.xlu0 %127
    %v129 = vrot.slane %v128, 4
    %v130 = vadd.f32 %v128, %v129
    %v131 = vrot.slane %v130, 2
    %v132 = vadd.f32 %v130, %v131
    %v133 = vrot.slane %v132, 1
    %v134 = vadd.f32 %v132, %v133
    %s135 = vtos %v134
    %v136 = vrcp.pop 32.0
    %s137 = vtos %v136
    %s138 = smul.f32 %s135, %s137
    %v140 = vsel %vm39, %v105, 0
    %142 = vmatprep.subr.mxu0 0.0
    %143 = vmatpush1.xpose.msra.mxu0 %v140
    %144 = vmatprep.subr.mxu0 0.0
    %145 = vmatpush1.xpose.msra.mxu0 0.0
    %146 = vmatprep.subr.mxu0 0.0
    %147 = vmatpush1.xpose.msra.mxu0 0.0
    %148 = vmatprep.subr.mxu0 0.0
    %149 = vmatpush1.xpose.msra.mxu0 0.0
    %150 = vmatprep.subr.mxu0 0.0
    %151 = vmatpush1.xpose.msra.mxu0 0.0
    %152 = vmatprep.subr.mxu0 0.0
    %153 = vmatpush1.xpose.msra.mxu0 0.0
    %154 = vmatprep.subr.mxu0 0.0
    %155 = vmatpush1.xpose.msra.mxu0 0.0
    %156 = vmatprep.subr.mxu0 0.0
    %157 = vmatpush1.xpose.msra.mxu0 0.0
    %158 = vmatprep.subr.mxu0 0.0
    %159 = vmatpush1.xpose.msra.mxu0 0.0
    %160 = vmatprep.subr.mxu0 0.0
    %161 = vmatpush1.xpose.msra.mxu0 0.0
    %162 = vmatprep.subr.mxu0 0.0
    %163 = vmatpush1.xpose.msra.mxu0 0.0
    %164 = vmatprep.subr.mxu0 0.0
    %165 = vmatpush1.xpose.msra.mxu0 0.0
    %166 = vmatprep.subr.mxu0 0.0
    %167 = vmatpush1.xpose.msra.mxu0 0.0
    %168 = vmatprep.subr.mxu0 0.0
    %169 = vmatpush1.xpose.msra.mxu0 0.0
    %170 = vmatprep.subr.mxu0 0.0
    %171 = vmatpush1.xpose.msra.mxu0 0.0
    %172 = vmatprep.subr.mxu0 0.0
    %173 = vmatpush1.xpose.msra.mxu0 0.0
    %174 = vmatprep.subr.mxu0 0.0
    %175 = vmatpush1.xpose.msra.mxu0 0.0
    %176 = vmatprep.subr.mxu0 0.0
    %177 = vmatpush1.xpose.msra.mxu0 0.0
    %178 = vmatprep.subr.mxu0 0.0
    %179 = vmatpush1.xpose.msra.mxu0 0.0
    %180 = vmatprep.subr.mxu0 0.0
    %181 = vmatpush1.xpose.msra.mxu0 0.0
    %182 = vmatprep.subr.mxu0 0.0
    %183 = vmatpush1.xpose.msra.mxu0 0.0
    %184 = vmatprep.subr.mxu0 0.0
    %185 = vmatpush1.xpose.msra.mxu0 0.0
    %186 = vmatprep.subr.mxu0 0.0
    %187 = vmatpush1.xpose.msra.mxu0 0.0
    %188 = vmatprep.subr.mxu0 0.0
    %189 = vmatpush1.xpose.msra.mxu0 0.0
    %190 = vmatprep.subr.mxu0 0.0
    %191 = vmatpush1.xpose.msra.mxu0 0.0
    %192 = vmatprep.subr.mxu0 0.0
    %193 = vmatpush1.xpose.msra.mxu0 0.0
    %194 = vmatprep.subr.mxu0 0.0
    %195 = vmatpush1.xpose.msra.mxu0 0.0
    %196 = vmatprep.subr.mxu0 0.0
    %197 = vmatpush1.xpose.msra.mxu0 0.0
    %198 = vmatprep.subr.mxu0 0.0
    %199 = vmatpush1.xpose.msra.mxu0 0.0
    %200 = vmatprep.subr.mxu0 0.0
    %201 = vmatpush1.xpose.msra.mxu0 0.0
    %202 = vmatprep.subr.mxu0 0.0
    %203 = vmatpush1.xpose.msra.mxu0 0.0
    %204 = vmatprep.subr.mxu0 0.0
    %205 = vmatpush1.xpose.msra.mxu0 0.0
    %206 = vmatprep.mubr.f32.mxu0 0.0
    %207 = vmatmul.mubr.f32.gmra.mrb[0].mxu0 %v140
    %v208 = vpop.f32.mrb[0].mxu0
    %v209 = vadd.f32 0.0, %v208
    %v210 = vpop.f32.mrb[0].mxu0
    %211 = vdwg.mxu0
    %v212 = vmul.f32 %v209, %v209
    %vm213 = vcmask 64512
    %v214 = vsel %vm213, %v212, 0.0
    %215 = vadd.xlane.f32.xlu0 %v214
    %v216 = vpop.xlane.xlu0 %215
    %v217 = vrot.slane %v216, 4
    %v218 = vadd.f32 %v216, %v217
    %v219 = vrot.slane %v218, 2
    %v220 = vadd.f32 %v218, %v219
    %v221 = vrot.slane %v220, 1
    %v222 = vadd.f32 %v220, %v221
    %s223 = vtos %v222
    %s224 = smul.f32 %s223, 0.020408163
    %v225 = vmul.f32 %v114, %v114
    %v226 = vsel %vm125, %v225, 0.0
    %227 = vadd.xlane.f32.xlu0 %v226
    %v228 = vpop.xlane.xlu0 %227
    %v229 = vrot.slane %v228, 4
    %v230 = vadd.f32 %v228, %v229
    %v231 = vrot.slane %v230, 2
    %v232 = vadd.f32 %v230, %v231
    %v233 = vrot.slane %v232, 1
    %v234 = vadd.f32 %v232, %v233
    %s235 = vtos %v234
    %s236 = ssub.f32 %s224, %s235
    %s237 = smul.f32 %s236, 0.03125
    %v238 = vsel %vm39, %v37, 0.0
    %v239 = vrot.slane %v238, 4
    %v240 = vadd.f32 %v238, %v239
    %v241 = vrot.slane %v240, 2
    %v242 = vadd.f32 %v240, %v241
    %v243 = vrot.slane %v242, 1
    %v244 = vadd.f32 %v242, %v243
    %v245 = vmul.f32 %v244, 0.125
    %v246 = vsub.f32 %v37, %v245
    %v247 = vmul.f32 %v246, %v246
    %v248 = vsel %vm39, %v247, 0.0
    %v249 = vrot.slane %v248, 4
    %v250 = vadd.f32 %v248, %v249
    %v251 = vrot.slane %v250, 2
    %v252 = vadd.f32 %v250, %v251
    %v253 = vrot.slane %v252, 1
    %v254 = vadd.f32 %v252, %v253
    %v255 = vmul.f32 %v254, 0.14285715
    %v256 = vadd.f32 %v255, 0.0001
    %v257 = vrsqrt.pop %v256
    %v258 = vmul.f32 %v256, %v257
    %vm259 = vcmp.eq.f32.partialorder %v256, inf
    %v260 = vsel %vm259, %v256, %v258
    %vm261 = vcmp.eq.f32.partialorder %v256, 0.0
    %v262 = vand.u32 %v256, 2147483648
    %v263 = vsel %vm261, %v262, %v260
    %v264 = vsub.f32 1.0, %v263
    %v265 = vmax.f32 %v264, 0.0
    %v266 = vsel %vm125, %v265, 0.0
    %267 = vadd.xlane.f32.xlu0 %v266
    %v268 = vpop.xlane.xlu0 %267
    %v269 = vrot.slane %v268, 4
    %v270 = vadd.f32 %v268, %v269
    %v271 = vrot.slane %v270, 2
    %v272 = vadd.f32 %v270, %v271
    %v273 = vrot.slane %v272, 1
    %v274 = vadd.f32 %v272, %v273
    %s275 = vtos %v274
    %v276 = vrcp.pop 32.0
    %s277 = vtos %v276
    %s278 = smul.f32 %s275, %s277
    %v280 = vsel %vm39, %v246, 0
    %282 = vmatprep.subr.mxu0 0.0
    %283 = vmatpush1.xpose.msra.mxu0 %v280
    %284 = vmatprep.subr.mxu0 0.0
    %285 = vmatpush1.xpose.msra.mxu0 0.0
    %286 = vmatprep.subr.mxu0 0.0
    %287 = vmatpush1.xpose.msra.mxu0 0.0
    %288 = vmatprep.subr.mxu0 0.0
    %289 = vmatpush1.xpose.msra.mxu0 0.0
    %290 = vmatprep.subr.mxu0 0.0
    %291 = vmatpush1.xpose.msra.mxu0 0.0
    %292 = vmatprep.subr.mxu0 0.0
    %293 = vmatpush1.xpose.msra.mxu0 0.0
    %294 = vmatprep.subr.mxu0 0.0
    %295 = vmatpush1.xpose.msra.mxu0 0.0
    %296 = vmatprep.subr.mxu0 0.0
    %297 = vmatpush1.xpose.msra.mxu0 0.0
    %298 = vmatprep.subr.mxu0 0.0
    %299 = vmatpush1.xpose.msra.mxu0 0.0
    %300 = vmatprep.subr.mxu0 0.0
    %301 = vmatpush1.xpose.msra.mxu0 0.0
    %302 = vmatprep.subr.mxu0 0.0
    %303 = vmatpush1.xpose.msra.mxu0 0.0
    %304 = vmatprep.subr.mxu0 0.0
    %305 = vmatpush1.xpose.msra.mxu0 0.0
    %306 = vmatprep.subr.mxu0 0.0
    %307 = vmatpush1.xpose.msra.mxu0 0.0
    %308 = vmatprep.subr.mxu0 0.0
    %309 = vmatpush1.xpose.msra.mxu0 0.0
    %310 = vmatprep.subr.mxu0 0.0
    %311 = vmatpush1.xpose.msra.mxu0 0.0
    %312 = vmatprep.subr.mxu0 0.0
    %313 = vmatpush1.xpose.msra.mxu0 0.0
    %314 = vmatprep.subr.mxu0 0.0
    %315 = vmatpush1.xpose.msra.mxu0 0.0
    %316 = vmatprep.subr.mxu0 0.0
    %317 = vmatpush1.xpose.msra.mxu0 0.0
    %318 = vmatprep.subr.mxu0 0.0
    %319 = vmatpush1.xpose.msra.mxu0 0.0
    %320 = vmatprep.subr.mxu0 0.0
    %321 = vmatpush1.xpose.msra.mxu0 0.0
    %322 = vmatprep.subr.mxu0 0.0
    %323 = vmatpush1.xpose.msra.mxu0 0.0
    %324 = vmatprep.subr.mxu0 0.0
    %325 = vmatpush1.xpose.msra.mxu0 0.0
    %326 = vmatprep.subr.mxu0 0.0
    %327 = vmatpush1.xpose.msra.mxu0 0.0
    %328 = vmatprep.subr.mxu0 0.0
    %329 = vmatpush1.xpose.msra.mxu0 0.0
    %330 = vmatprep.subr.mxu0 0.0
    %331 = vmatpush1.xpose.msra.mxu0 0.0
    %332 = vmatprep.subr.mxu0 0.0
    %333 = vmatpush1.xpose.msra.mxu0 0.0
    %334 = vmatprep.subr.mxu0 0.0
    %335 = vmatpush1.xpose.msra.mxu0 0.0
    %336 = vmatprep.subr.mxu0 0.0
    %337 = vmatpush1.xpose.msra.mxu0 0.0
    %338 = vmatprep.subr.mxu0 0.0
    %339 = vmatpush1.xpose.msra.mxu0 0.0
    %340 = vmatprep.subr.mxu0 0.0
    %341 = vmatpush1.xpose.msra.mxu0 0.0
    %342 = vmatprep.subr.mxu0 0.0
    %343 = vmatpush1.xpose.msra.mxu0 0.0
    %344 = vmatprep.subr.mxu0 0.0
    %345 = vmatpush1.xpose.msra.mxu0 0.0
    %346 = vmatprep.mubr.f32.mxu0 0.0
    %347 = vmatmul.mubr.f32.gmra.mrb[0].mxu0 %v280
    %v348 = vpop.f32.mrb[0].mxu0
    %v349 = vadd.f32 0.0, %v348
    %v350 = vpop.f32.mrb[0].mxu0
    %351 = vdwg.mxu0
    %v352 = vmul.f32 %v349, %v349
    %v353 = vsel %vm213, %v352, 0.0
    %354 = vadd.xlane.f32.xlu0 %v353
    %v355 = vpop.xlane.xlu0 %354
    %v356 = vrot.slane %v355, 4
    %v357 = vadd.f32 %v355, %v356
    %v358 = vrot.slane %v357, 2
    %v359 = vadd.f32 %v357, %v358
    %v360 = vrot.slane %v359, 1
    %v361 = vadd.f32 %v359, %v360
    %s362 = vtos %v361
    %s363 = smul.f32 %s362, 0.020408163
    %v364 = vmul.f32 %v255, %v255
    %v365 = vsel %vm125, %v364, 0.0
    %366 = vadd.xlane.f32.xlu0 %v365
    %v367 = vpop.xlane.xlu0 %366
    %v368 = vrot.slane %v367, 4
    %v369 = vadd.f32 %v367, %v368
    %v370 = vrot.slane %v369, 2
    %v371 = vadd.f32 %v369, %v370
    %v372 = vrot.slane %v371, 1
    %v373 = vadd.f32 %v371, %v372
    %s374 = vtos %v373
    %s375 = ssub.f32 %s363, %s374
    %s376 = smul.f32 %s375, 0.03125
    %s377 = sadd.f32 %s138, %s278
    %s378 = smul.f32 %s377, 0.5
    %s379 = sadd.f32 %s237, %s376
    %s380 = scalar_lea.smem [#allocation7], 0
    %381 = sst [smem:[%s380]] %s96
    %s382 = scalar_lea.smem [#allocation7], 1
    %383 = sst [smem:[%s382]] %s378
    %s384 = scalar_lea.smem [#allocation7], 2
    %385 = sst [smem:[%s384]] %s379
    %s386 = scalar_lea.smem [#allocation7], 3
    %387 = sst [smem:[%s386]] %s83
    // Predicated region
    $region18: #{tpu_custom_call.1} parent=1 // pred_check
      _
    $region19: #{tpu_custom_call.1} parent=1 // pred_check_branch
      %389 = sbr.rel (0) target = $region21
    $region20: #{tpu_custom_call.1} parent=1 // pred_region
      %s391 = ssub.s32 16, 16
      %392 = vsyncadd [#allocation4], %s391
      %395 = dma.smem_to_hbm [#allocation7], 16, %s2, [#allocation4]
    $region21: #{tpu_custom_call.1} parent=1 // pred_fallthru
      _
    // Predicated region
    $region22: #{tpu_custom_call.1} parent=1 // pred_check
      _
    $region23: #{tpu_custom_call.1} parent=1 // pred_check_branch
      %397 = sbr.rel (0) target = $region25
    $region24: #{tpu_custom_call.1} parent=1 // pred_region
      %398 = dma.done [#allocation4], 16
    $region25: #{tpu_custom_call.1} parent=1 // pred_fallthru
      _
    %399 = sfence
    %400 = vsyncpa [#allocation3], 1
    %401 = vsyncpa [#allocation6], 1
    %402 = vsyncpa [#allocation4], 1

</llo_original>
